<compile_context>
chip_gen: v5e
topology: v5e:2x2
jax: 0.10.0
libtpu: 0.0.40
codegen_flags: <defaults>
</compile_context>

<pallas_src>
import functools

import jax
import jax.numpy as jnp
from jax import lax
from jax.experimental import pallas as pl
from jax.experimental.pallas import tpu as pltpu  # noqa: F401


def _rnn_kernel(x_ref, w_ih_ref, w_hh_ref, b_ih_ref, b_hh_ref,
                w_fc_ref, b_fc_ref, out_ref, *, batch):
    """Whole forward pass in one invocation; every operand resident in VMEM.

    x_ref is time-major flat: row t*B + b holds x[b, t, :].
    Weights arrive in PyTorch (out_features, in_features) layout, untransposed.
    """
    B = batch
    TB = x_ref.shape[0]
    T = TB // B

    # Combined RNN bias (single vreg add, done in-kernel -> no wrapper op).
    b = b_ih_ref[...] + b_hh_ref[...]                               # (1, H)

    # Hoisted input projection over all timesteps:  x @ W_ih^T + (b_ih+b_hh).
    # Contract dim 1 of W_ih (trans-b form) so the 150 KB weight is never
    # transposed in the wrapper.  Rows come out time-major: row t*B + b.
    # TODO(synk): cast x/W_ih to bf16 here (preferred_element_type=f32) once a
    # looser-than-1e-4 tolerance vs the f32 reference is acceptable.
    x_proj = lax.dot_general(
        x_ref[...], w_ih_ref[...],
        dimension_numbers=(((1,), (1,)), ((), ())),
        preferred_element_type=jnp.float32) + b                     # (T*B, H)

    # Transpose W_hh ONCE (in-kernel, off the wrapper path); the unrolled
    # recurrence then runs plain non-transposed MXU matmuls every step.
    whh_t = w_hh_ref[...].T                                          # (H, H)

    # Recurrence, fully unrolled (T small & static).  h_0 = 0 so step 0 skips
    # the recurrent matmul.  Each step reads a contiguous static row slice of
    # the time-major x_proj -- no per-step sublane gather on the serial chain.
    # TODO(synk): keep W_hh^T resident in the MXU weight registers across the
    # T-1 serial steps via pltpu.matmul_push_rhs / matmul_acc_lhs / matmul_pop
    # (largest remaining in-kernel latency win); jnp.dot kept for portability.
    h = jnp.tanh(x_proj[0:B])                                        # (B, H)
    for t in range(1, T):
        h = jnp.tanh(x_proj[t * B:(t + 1) * B]
                     + jnp.dot(h, whh_t, preferred_element_type=jnp.float32))

    # FC head on the last hidden state:  h @ W_fc^T + b_fc  (trans-b form).
    out_ref[...] = lax.dot_general(
        h, w_fc_ref[...],
        dimension_numbers=(((1,), (1,)), ((), ())),
        preferred_element_type=jnp.float32) + b_fc_ref[...]          # (B, O)


@jax.jit
def rnn_forward(x, w_ih, w_hh, b_ih, b_hh, w_fc, b_fc):
    """x: (B, T, D) batch-first float32.  Weights in PyTorch layout:
    w_ih (H, D), w_hh (H, H), b_ih (H,), b_hh (H,), w_fc (O, H), b_fc (O,).
    Returns (B, O)."""
    B, T, D = x.shape
    H = w_ih.shape[0]
    O = w_fc.shape[0]

    # Only real wrapper op: permute x to time-major and flatten (B*T*D*4 bytes,
    # ~19 KB here -- tiny vs. the 150 KB W_ih the previous version transposed
    # per call).  Everything else below is a free metadata reshape.
    x_tm = jnp.transpose(x, (1, 0, 2)).reshape(T * B, D)             # (T*B, D)
    b_ih2 = b_ih.reshape(1, H)
    b_hh2 = b_hh.reshape(1, H)
    b_fc2 = b_fc.reshape(1, O)

    kernel = functools.partial(_rnn_kernel, batch=B)

    # Gridless single invocation: every operand is a whole-array VMEM block
    # (~250 KB total), so there is no double-buffered weight traffic and no
    # per-grid-step pipeline bookkeeping.
    # TODO(synk): at large batch, add a batch-block grid axis with
    # dimension_semantics=("parallel",) so v7x's two TensorCores split the
    # work, and time-chunk the hoisted projection (pltpu.emit_pipeline) before
    # the all-resident design hits v7x's 64 MiB VMEM.
    return pl.pallas_call(
        kernel,
        out_shape=jax.ShapeDtypeStruct((B, O), jnp.float32),
    )(x_tm, w_ih, w_hh, b_ih2, b_hh2, w_fc, b_fc2)


def rnn_reference(x, w_ih, w_hh, b_ih, b_hh, w_fc, b_fc):
    """Pure-JAX reference matching torch.nn.RNN(batch_first=True) + Linear."""
    B, T, D = x.shape
    H = w_ih.shape[0]
    h = jnp.zeros((B, H), jnp.float32)
    for t in range(T):
        h = jnp.tanh(x[:, t, :] @ w_ih.T + b_ih + h @ w_hh.T + b_hh)
    return h @ w_fc.T + b_fc


if __name__ == "__main__":
    # Module defaults: input_size=300, hidden_size=128, num_layers=1,
    # output_size=2, fc_layers_sizes=[]  (fc == single Linear(128, 2)).
    B, T, D, H, O = 2, 8, 300, 128, 2

    key = jax.random.PRNGKey(0)
    k_x, k1, k2, k3, k4, k5, k6 = jax.random.split(key, 7)

    # Deterministic init mimicking PyTorch's U(-1/sqrt(H), 1/sqrt(H)).
    s = 1.0 / jnp.sqrt(H)
    x = jax.random.normal(k_x, (B, T, D), jnp.float32)
    w_ih = jax.random.uniform(k1, (H, D), jnp.float32, -s, s)
    w_hh = jax.random.uniform(k2, (H, H), jnp.float32, -s, s)
    b_ih = jax.random.uniform(k3, (H,), jnp.float32, -s, s)
    b_hh = jax.random.uniform(k4, (H,), jnp.float32, -s, s)
    w_fc = jax.random.uniform(k5, (O, H), jnp.float32, -s, s)
    b_fc = jax.random.uniform(k6, (O,), jnp.float32, -s, s)

    out = rnn_forward(x, w_ih, w_hh, b_ih, b_hh, w_fc, b_fc)
    out = jax.block_until_ready(out)

    ref = rnn_reference(x, w_ih, w_hh, b_ih, b_hh, w_fc, b_fc)
    assert out.shape == (B, O), out.shape
    assert jnp.allclose(out, ref, atol=1e-4, rtol=1e-4), (out, ref)

    print("KERNEL_OK")
</pallas_src>

<mosaic_0001>
module attributes {stable_mosaic.version = 11 : i64} {
  func.func @_rnn_kernel(%arg0: memref<16x300xf32, #tpu.memory_space<vmem>>, %arg1: memref<128x300xf32, #tpu.memory_space<vmem>>, %arg2: memref<128x128xf32, #tpu.memory_space<vmem>>, %arg3: memref<1x128xf32, #tpu.memory_space<vmem>>, %arg4: memref<1x128xf32, #tpu.memory_space<vmem>>, %arg5: memref<2x128xf32, #tpu.memory_space<vmem>>, %arg6: memref<1x2xf32, #tpu.memory_space<vmem>>, %arg7: memref<2x2xf32, #tpu.memory_space<vmem>>) attributes {dimension_semantics = [], scalar_prefetch = 0 : i64, scratch_operands = 0 : i64, tpu.core_type = #tpu.core_type<tc>} {
    %c0 = arith.constant 0 : index
    %c0_0 = arith.constant 0 : index
    %0 = vector.load %arg3[%c0, %c0_0] : memref<1x128xf32, #tpu.memory_space<vmem>>, vector<1x128xf32>
    %c0_1 = arith.constant 0 : index
    %c0_2 = arith.constant 0 : index
    %1 = vector.load %arg4[%c0_1, %c0_2] : memref<1x128xf32, #tpu.memory_space<vmem>>, vector<1x128xf32>
    %2 = arith.addf %0, %1 : vector<1x128xf32>
    %c0_3 = arith.constant 0 : index
    %c0_4 = arith.constant 0 : index
    %3 = vector.load %arg0[%c0_3, %c0_4] : memref<16x300xf32, #tpu.memory_space<vmem>>, vector<16x300xf32>
    %c0_5 = arith.constant 0 : index
    %c0_6 = arith.constant 0 : index
    %4 = vector.load %arg1[%c0_5, %c0_6] : memref<128x300xf32, #tpu.memory_space<vmem>>, vector<128x300xf32>
    %cst = arith.constant dense<0.000000e+00> : vector<16x128xf32>
    %5 = tpu.matmul %3, %4, %cst {dimension_numbers = #tpu.dot_dimension_numbers<[1], [1], [0], [0], [0, 0, 1, 0], [], []>} : vector<16x300xf32>, vector<128x300xf32>, vector<16x128xf32> -> vector<16x128xf32>
    %6 = vector.broadcast %2 : vector<1x128xf32> to vector<16x128xf32>
    %7 = arith.addf %5, %6 : vector<16x128xf32>
    %c0_7 = arith.constant 0 : index
    %c0_8 = arith.constant 0 : index
    %8 = vector.load %arg2[%c0_7, %c0_8] : memref<128x128xf32, #tpu.memory_space<vmem>>, vector<128x128xf32>
    %9 = tpu.transpose %8, [1, 0] : vector<128x128xf32> -> vector<128x128xf32>
    %10 = vector.extract_strided_slice %7 {offsets = [0, 0], sizes = [2, 128], strides = [1, 1]} : vector<16x128xf32> to vector<2x128xf32>
    %11 = math.tanh %10 : vector<2x128xf32>
    %12 = vector.extract_strided_slice %7 {offsets = [2, 0], sizes = [2, 128], strides = [1, 1]} : vector<16x128xf32> to vector<2x128xf32>
    %cst_9 = arith.constant dense<0.000000e+00> : vector<2x128xf32>
    %13 = tpu.matmul %11, %9, %cst_9 {dimension_numbers = #tpu.dot_dimension_numbers<[1], [0], [0], [1], [0, 0, 1, 1], [], []>} : vector<2x128xf32>, vector<128x128xf32>, vector<2x128xf32> -> vector<2x128xf32>
    %14 = arith.addf %12, %13 : vector<2x128xf32>
    %15 = math.tanh %14 : vector<2x128xf32>
    %16 = vector.extract_strided_slice %7 {offsets = [4, 0], sizes = [2, 128], strides = [1, 1]} : vector<16x128xf32> to vector<2x128xf32>
    %cst_10 = arith.constant dense<0.000000e+00> : vector<2x128xf32>
    %17 = tpu.matmul %15, %9, %cst_10 {dimension_numbers = #tpu.dot_dimension_numbers<[1], [0], [0], [1], [0, 0, 1, 1], [], []>} : vector<2x128xf32>, vector<128x128xf32>, vector<2x128xf32> -> vector<2x128xf32>
    %18 = arith.addf %16, %17 : vector<2x128xf32>
    %19 = math.tanh %18 : vector<2x128xf32>
    %20 = vector.extract_strided_slice %7 {offsets = [6, 0], sizes = [2, 128], strides = [1, 1]} : vector<16x128xf32> to vector<2x128xf32>
    %cst_11 = arith.constant dense<0.000000e+00> : vector<2x128xf32>
    %21 = tpu.matmul %19, %9, %cst_11 {dimension_numbers = #tpu.dot_dimension_numbers<[1], [0], [0], [1], [0, 0, 1, 1], [], []>} : vector<2x128xf32>, vector<128x128xf32>, vector<2x128xf32> -> vector<2x128xf32>
    %22 = arith.addf %20, %21 : vector<2x128xf32>
    %23 = math.tanh %22 : vector<2x128xf32>
    %24 = vector.extract_strided_slice %7 {offsets = [8, 0], sizes = [2, 128], strides = [1, 1]} : vector<16x128xf32> to vector<2x128xf32>
    %cst_12 = arith.constant dense<0.000000e+00> : vector<2x128xf32>
    %25 = tpu.matmul %23, %9, %cst_12 {dimension_numbers = #tpu.dot_dimension_numbers<[1], [0], [0], [1], [0, 0, 1, 1], [], []>} : vector<2x128xf32>, vector<128x128xf32>, vector<2x128xf32> -> vector<2x128xf32>
    %26 = arith.addf %24, %25 : vector<2x128xf32>
    %27 = math.tanh %26 : vector<2x128xf32>
    %28 = vector.extract_strided_slice %7 {offsets = [10, 0], sizes = [2, 128], strides = [1, 1]} : vector<16x128xf32> to vector<2x128xf32>
    %cst_13 = arith.constant dense<0.000000e+00> : vector<2x128xf32>
    %29 = tpu.matmul %27, %9, %cst_13 {dimension_numbers = #tpu.dot_dimension_numbers<[1], [0], [0], [1], [0, 0, 1, 1], [], []>} : vector<2x128xf32>, vector<128x128xf32>, vector<2x128xf32> -> vector<2x128xf32>
    %30 = arith.addf %28, %29 : vector<2x128xf32>
    %31 = math.tanh %30 : vector<2x128xf32>
    %32 = vector.extract_strided_slice %7 {offsets = [12, 0], sizes = [2, 128], strides = [1, 1]} : vector<16x128xf32> to vector<2x128xf32>
    %cst_14 = arith.constant dense<0.000000e+00> : vector<2x128xf32>
    %33 = tpu.matmul %31, %9, %cst_14 {dimension_numbers = #tpu.dot_dimension_numbers<[1], [0], [0], [1], [0, 0, 1, 1], [], []>} : vector<2x128xf32>, vector<128x128xf32>, vector<2x128xf32> -> vector<2x128xf32>
    %34 = arith.addf %32, %33 : vector<2x128xf32>
    %35 = math.tanh %34 : vector<2x128xf32>
    %36 = vector.extract_strided_slice %7 {offsets = [14, 0], sizes = [2, 128], strides = [1, 1]} : vector<16x128xf32> to vector<2x128xf32>
    %cst_15 = arith.constant dense<0.000000e+00> : vector<2x128xf32>
    %37 = tpu.matmul %35, %9, %cst_15 {dimension_numbers = #tpu.dot_dimension_numbers<[1], [0], [0], [1], [0, 0, 1, 1], [], []>} : vector<2x128xf32>, vector<128x128xf32>, vector<2x128xf32> -> vector<2x128xf32>
    %38 = arith.addf %36, %37 : vector<2x128xf32>
    %39 = math.tanh %38 : vector<2x128xf32>
    %c0_16 = arith.constant 0 : index
    %c0_17 = arith.constant 0 : index
    %40 = vector.load %arg5[%c0_16, %c0_17] : memref<2x128xf32, #tpu.memory_space<vmem>>, vector<2x128xf32>
    %cst_18 = arith.constant dense<0.000000e+00> : vector<2x2xf32>
    %41 = tpu.matmul %39, %40, %cst_18 {dimension_numbers = #tpu.dot_dimension_numbers<[1], [1], [0], [0], [0, 0, 1, 0], [], []>} : vector<2x128xf32>, vector<2x128xf32>, vector<2x2xf32> -> vector<2x2xf32>
    %c0_19 = arith.constant 0 : index
    %c0_20 = arith.constant 0 : index
    %42 = vector.load %arg6[%c0_19, %c0_20] : memref<1x2xf32, #tpu.memory_space<vmem>>, vector<1x2xf32>
    %43 = vector.broadcast %42 : vector<1x2xf32> to vector<2x2xf32>
    %44 = arith.addf %41, %43 : vector<2x2xf32>
    %c0_21 = arith.constant 0 : index
    %c0_22 = arith.constant 0 : index
    %45 = vector.load %arg7[%c0_21, %c0_22] : memref<2x2xf32, #tpu.memory_space<vmem>>, vector<2x2xf32>
    tpu.vector_store %arg7[%c0_21, %c0_22], %44 {strides = array<i32>} : memref<2x2xf32, #tpu.memory_space<vmem>>, vector<2x2xf32>,
    return
  }
}

</mosaic_0001>

<llo_original>
// kernel: rnn_forward.1
$region0: #{rnn_forward.1}
  #allocation0 [shape = 'u32[]', space=smem, size = 0x4, offset = 0x4, fixed_abs, tag = 'smem constant byte address 0x4 - core index']
  #allocation1 [shape = 'u32[72,128]{1,0:T(1,128)}', space=vmem, size = 0x9000, scoped, tag = 'internal scratch']
  %s0 = inlined_call_operand.vmem [shape: f32[16,300], index: 0, kind: input, shape index: {}]
  %s1 = inlined_call_operand.vmem [shape: f32[128,300], index: 1, kind: input, shape index: {}]
  %s2 = inlined_call_operand.vmem [shape: f32[128,128], index: 2, kind: input, shape index: {}]
  %s3 = inlined_call_operand.vmem [shape: f32[1,128], index: 3, kind: input, shape index: {}]
  %s4 = inlined_call_operand.vmem [shape: f32[1,128], index: 4, kind: input, shape index: {}]
  %s5 = inlined_call_operand.vmem [shape: f32[2,128], index: 5, kind: input, shape index: {}]
  %s6 = inlined_call_operand.vmem [shape: f32[1,2], index: 6, kind: input, shape index: {}]
  %s7 = inlined_call_operand.hbm [shape: f32[2,2], index: 7, kind: output, shape index: {}]
  %s8 = sld [smem:[#allocation0]]
  $region38: #{rnn_forward.1} parent=0
    _
  %s10 = ssub.s32 1, %s8
  %s11 = scalar_select 0, %s10, %s8
  $region1: #{rnn_forward.1} parent=0
    #allocation2 [shape = 'u8[1024]{0}', space=vmem, size = 0x400, scoped, tag = 'output window, operand 0, single buffered']
    #allocation3 [shape = 's32[1]{0}', space=sflag, size = 0x4, scoped, tag = 'scoped memory for rnn_forward.1']
    %12 = vsyncpa [#allocation3], 0
    // Predicated region
    $region2: #{rnn_forward.1} parent=1 // pred_check
      _
    $region3: #{rnn_forward.1} parent=1 // pred_check_branch
      %14 = sbr.rel (0) target = $region5
    $region4: #{rnn_forward.1} parent=1 // pred_region
      _
    $region5: #{rnn_forward.1} parent=1 // pred_fallthru
      _
    // Predicated region
    $region6: #{rnn_forward.1} parent=1 // pred_check
      _
    $region7: #{rnn_forward.1} parent=1 // pred_check_branch
      %16 = sbr.rel (0) target = $region9
    $region8: #{rnn_forward.1} parent=1 // pred_region
      _
    $region9: #{rnn_forward.1} parent=1 // pred_fallthru
      _
    // Predicated region
    $region10: #{rnn_forward.1} parent=1 // pred_check
      _
    $region11: #{rnn_forward.1} parent=1 // pred_check_branch
      %18 = sbr.rel (0) target = $region13
    $region12: #{rnn_forward.1} parent=1 // pred_region
      _
    $region13: #{rnn_forward.1} parent=1 // pred_fallthru
      _
    // Predicated region
    $region14: #{rnn_forward.1} parent=1 // pred_check
      _
    $region15: #{rnn_forward.1} parent=1 // pred_check_branch
      %20 = sbr.rel (0) target = $region17
    $region16: #{rnn_forward.1} parent=1 // pred_region
      _
    $region17: #{rnn_forward.1} parent=1 // pred_fallthru
      _
    // Predicated region
    $region18: #{rnn_forward.1} parent=1 // pred_check
      _
    $region19: #{rnn_forward.1} parent=1 // pred_check_branch
      %22 = sbr.rel (0) target = $region21
    $region20: #{rnn_forward.1} parent=1 // pred_region
      _
    $region21: #{rnn_forward.1} parent=1 // pred_fallthru
      _
    // Predicated region
    $region22: #{rnn_forward.1} parent=1 // pred_check
      _
    $region23: #{rnn_forward.1} parent=1 // pred_check_branch
      %24 = sbr.rel (0) target = $region25
    $region24: #{rnn_forward.1} parent=1 // pred_region
      _
    $region25: #{rnn_forward.1} parent=1 // pred_fallthru
      _
    // Predicated region
    $region26: #{rnn_forward.1} parent=1 // pred_check
      _
    $region27: #{rnn_forward.1} parent=1 // pred_check_branch
      %26 = sbr.rel (0) target = $region29
    $region28: #{rnn_forward.1} parent=1 // pred_region
      _
    $region29: #{rnn_forward.1} parent=1 // pred_fallthru
      _
    %v27 = vld [vmem:[%s3] sm:$0x1]
    %v28 = vld [vmem:[%s4] sm:$0x1]
    %v29 = vadd.f32 %v27, %v28
    %v30 = vld [vmem:[%s0] sm:$0xff]
    %v31 = vld [vmem:[%s0 + $0x8] sm:$0xff]
    %v32 = vld [vmem:[%s0 + $0x10] sm:$0xff]
    %v33 = vld [vmem:[%s0 + $0x18] sm:$0xff]
    %v34 = vld [vmem:[%s0 + $0x20] sm:$0xff]
    %v35 = vld [vmem:[%s0 + $0x28] sm:$0xff]
    %v36 = vld [vmem:[%s1] sm:$0xff]
    %v37 = vld [vmem:[%s1 + $0x8] sm:$0xff]
    %v38 = vld [vmem:[%s1 + $0x10] sm:$0xff]
    %v39 = vld [vmem:[%s1 + $0x18] sm:$0xff]
    %v40 = vld [vmem:[%s1 + $0x20] sm:$0xff]
    %v41 = vld [vmem:[%s1 + $0x28] sm:$0xff]
    %v42 = vld [vmem:[%s1 + $0x30] sm:$0xff]
    %v43 = vld [vmem:[%s1 + $0x38] sm:$0xff]
    %v44 = vld [vmem:[%s1 + $0x40] sm:$0xff]
    %v45 = vld [vmem:[%s1 + $0x48] sm:$0xff]
    %v46 = vld [vmem:[%s1 + $0x50] sm:$0xff]
    %v47 = vld [vmem:[%s1 + $0x58] sm:$0xff]
    %v48 = vld [vmem:[%s1 + $0x60] sm:$0xff]
    %v49 = vld [vmem:[%s1 + $0x68] sm:$0xff]
    %v50 = vld [vmem:[%s1 + $0x70] sm:$0xff]
    %v51 = vld [vmem:[%s1 + $0x78] sm:$0xff]
    %v52 = vld [vmem:[%s1 + $0x80] sm:$0xff]
    %v53 = vld [vmem:[%s1 + $0x88] sm:$0xff]
    %v54 = vld [vmem:[%s1 + $0x90] sm:$0xff]
    %v55 = vld [vmem:[%s1 + $0x98] sm:$0xff]
    %v56 = vld [vmem:[%s1 + $0xa0] sm:$0xff]
    %v57 = vld [vmem:[%s1 + $0xa8] sm:$0xff]
    %v58 = vld [vmem:[%s1 + $0xb0] sm:$0xff]
    %v59 = vld [vmem:[%s1 + $0xb8] sm:$0xff]
    %v60 = vld [vmem:[%s1 + $0xc0] sm:$0xff]
    %v61 = vld [vmem:[%s1 + $0xc8] sm:$0xff]
    %v62 = vld [vmem:[%s1 + $0xd0] sm:$0xff]
    %v63 = vld [vmem:[%s1 + $0xd8] sm:$0xff]
    %v64 = vld [vmem:[%s1 + $0xe0] sm:$0xff]
    %v65 = vld [vmem:[%s1 + $0xe8] sm:$0xff]
    %v66 = vld [vmem:[%s1 + $0xf0] sm:$0xff]
    %v67 = vld [vmem:[%s1 + $0xf8] sm:$0xff]
    %v68 = vld [vmem:[%s1 + $0x100] sm:$0xff]
    %v69 = vld [vmem:[%s1 + $0x108] sm:$0xff]
    %v70 = vld [vmem:[%s1 + $0x110] sm:$0xff]
    %v71 = vld [vmem:[%s1 + $0x118] sm:$0xff]
    %v72 = vld [vmem:[%s1 + $0x120] sm:$0xff]
    %v73 = vld [vmem:[%s1 + $0x128] sm:$0xff]
    %v74 = vld [vmem:[%s1 + $0x130] sm:$0xff]
    %v75 = vld [vmem:[%s1 + $0x138] sm:$0xff]
    %v76 = vld [vmem:[%s1 + $0x140] sm:$0xff]
    %v77 = vld [vmem:[%s1 + $0x148] sm:$0xff]
    %v78 = vld [vmem:[%s1 + $0x150] sm:$0xff]
    %v79 = vld [vmem:[%s1 + $0x158] sm:$0xff]
    %v80 = vld [vmem:[%s1 + $0x160] sm:$0xff]
    %v81 = vld [vmem:[%s1 + $0x168] sm:$0xff]
    %v82 = vld [vmem:[%s1 + $0x170] sm:$0xff]
    %v83 = vld [vmem:[%s1 + $0x178] sm:$0xff]
    %v85 = vperm.slane %v29, 0
    %vm87 = vcmask 359424
    %v89 = vsel %vm87, %v32, 0
    %v92 = vsel %vm87, %v35, 0
    %v95 = vsel %vm87, %v38, 0
    %v98 = vsel %vm87, %v41, 0
    %v101 = vsel %vm87, %v44, 0
    %v104 = vsel %vm87, %v47, 0
    %v107 = vsel %vm87, %v50, 0
    %v110 = vsel %vm87, %v53, 0
    %v113 = vsel %vm87, %v56, 0
    %v116 = vsel %vm87, %v59, 0
    %v119 = vsel %vm87, %v62, 0
    %v122 = vsel %vm87, %v65, 0
    %v125 = vsel %vm87, %v68, 0
    %v128 = vsel %vm87, %v71, 0
    %v131 = vsel %vm87, %v74, 0
    %v134 = vsel %vm87, %v77, 0
    %v137 = vsel %vm87, %v80, 0
    %v140 = vsel %vm87, %v83, 0
    %142 = vmatpush.xpose.msra.mxu0 %v81
    %143 = vmatpush.xpose.msra.mxu0 %v78
    %144 = vmatpush.xpose.msra.mxu0 %v75
    %145 = vmatpush.xpose.msra.mxu0 %v72
    %146 = vmatpush.xpose.msra.mxu0 %v69
    %147 = vmatpush.xpose.msra.mxu0 %v66
    %148 = vmatpush.xpose.msra.mxu0 %v63
    %149 = vmatpush.xpose.msra.mxu0 %v60
    %150 = vmatpush.xpose.msra.mxu0 %v57
    %151 = vmatpush.xpose.msra.mxu0 %v54
    %152 = vmatpush.xpose.msra.mxu0 %v51
    %153 = vmatpush.xpose.msra.mxu0 %v48
    %154 = vmatpush.xpose.msra.mxu0 %v45
    %155 = vmatpush.xpose.msra.mxu0 %v42
    %156 = vmatpush.xpose.msra.mxu0 %v39
    %157 = vmatpush.xpose.msra.mxu0 %v36
    %158 = vmatmul.f32.gmra.mxu0 %v30
    %v159 = vpop.f32.mrf.mxu0
    %v160 = vadd.f32 %v85, %v159
    %161 = vmatmul.f32.gmra.mxu0 %v33
    %v162 = vpop.f32.mrf.mxu0
    %v163 = vadd.f32 %v85, %v162
    %164 = vdwg.mxu0
    %165 = vmatpush.xpose.msra.mxu0 %v82
    %166 = vmatpush.xpose.msra.mxu0 %v79
    %167 = vmatpush.xpose.msra.mxu0 %v76
    %168 = vmatpush.xpose.msra.mxu0 %v73
    %169 = vmatpush.xpose.msra.mxu0 %v70
    %170 = vmatpush.xpose.msra.mxu0 %v67
    %171 = vmatpush.xpose.msra.mxu0 %v64
    %172 = vmatpush.xpose.msra.mxu0 %v61
    %173 = vmatpush.xpose.msra.mxu0 %v58
    %174 = vmatpush.xpose.msra.mxu0 %v55
    %175 = vmatpush.xpose.msra.mxu0 %v52
    %176 = vmatpush.xpose.msra.mxu0 %v49
    %177 = vmatpush.xpose.msra.mxu0 %v46
    %178 = vmatpush.xpose.msra.mxu0 %v43
    %179 = vmatpush.xpose.msra.mxu0 %v40
    %180 = vmatpush.xpose.msra.mxu0 %v37
    %181 = vmatmul.f32.gmra.mxu0 %v31
    %v182 = vpop.f32.mrf.mxu0
    %v183 = vadd.f32 %v160, %v182
    %184 = vmatmul.f32.gmra.mxu0 %v34
    %v185 = vpop.f32.mrf.mxu0
    %v186 = vadd.f32 %v163, %v185
    %187 = vdwg.mxu0
    %188 = vmatpush.xpose.msra.mxu0 %v140
    %189 = vmatpush.xpose.msra.mxu0 %v137
    %190 = vmatpush.xpose.msra.mxu0 %v134
    %191 = vmatpush.xpose.msra.mxu0 %v131
    %192 = vmatpush.xpose.msra.mxu0 %v128
    %193 = vmatpush.xpose.msra.mxu0 %v125
    %194 = vmatpush.xpose.msra.mxu0 %v122
    %195 = vmatpush.xpose.msra.mxu0 %v119
    %196 = vmatpush.xpose.msra.mxu0 %v116
    %197 = vmatpush.xpose.msra.mxu0 %v113
    %198 = vmatpush.xpose.msra.mxu0 %v110
    %199 = vmatpush.xpose.msra.mxu0 %v107
    %200 = vmatpush.xpose.msra.mxu0 %v104
    %201 = vmatpush.xpose.msra.mxu0 %v101
    %202 = vmatpush.xpose.msra.mxu0 %v98
    %203 = vmatpush.xpose.msra.mxu0 %v95
    %204 = vmatmul.f32.gmra.mxu0 %v89
    %v205 = vpop.f32.mrf.mxu0
    %v206 = vadd.f32 %v183, %v205
    %207 = vmatmul.f32.gmra.mxu0 %v92
    %v208 = vpop.f32.mrf.mxu0
    %v209 = vadd.f32 %v186, %v208
    %210 = vdwg.mxu0
    %v211 = vld [vmem:[%s2] sm:$0xff]
    %v212 = vld [vmem:[%s2 + $0x8] sm:$0xff]
    %v213 = vld [vmem:[%s2 + $0x10] sm:$0xff]
    %v214 = vld [vmem:[%s2 + $0x18] sm:$0xff]
    %v215 = vld [vmem:[%s2 + $0x20] sm:$0xff]
    %v216 = vld [vmem:[%s2 + $0x28] sm:$0xff]
    %v217 = vld [vmem:[%s2 + $0x30] sm:$0xff]
    %v218 = vld [vmem:[%s2 + $0x38] sm:$0xff]
    %v219 = vld [vmem:[%s2 + $0x40] sm:$0xff]
    %v220 = vld [vmem:[%s2 + $0x48] sm:$0xff]
    %v221 = vld [vmem:[%s2 + $0x50] sm:$0xff]
    %v222 = vld [vmem:[%s2 + $0x58] sm:$0xff]
    %v223 = vld [vmem:[%s2 + $0x60] sm:$0xff]
    %v224 = vld [vmem:[%s2 + $0x68] sm:$0xff]
    %v225 = vld [vmem:[%s2 + $0x70] sm:$0xff]
    %v226 = vld [vmem:[%s2 + $0x78] sm:$0xff]
    %v227 = vtanh.pop %v206
    %228 = vmatpush.xpose.msra.mxu0 %v226
    %229 = vmatpush.xpose.msra.mxu0 %v225
    %230 = vmatpush.xpose.msra.mxu0 %v224
    %231 = vmatpush.xpose.msra.mxu0 %v223
    %232 = vmatpush.xpose.msra.mxu0 %v222
    %233 = vmatpush.xpose.msra.mxu0 %v221
    %234 = vmatpush.xpose.msra.mxu0 %v220
    %235 = vmatpush.xpose.msra.mxu0 %v219
    %236 = vmatpush.xpose.msra.mxu0 %v218
    %237 = vmatpush.xpose.msra.mxu0 %v217
    %238 = vmatpush.xpose.msra.mxu0 %v216
    %239 = vmatpush.xpose.msra.mxu0 %v215
    %240 = vmatpush.xpose.msra.mxu0 %v214
    %241 = vmatpush.xpose.msra.mxu0 %v213
    %242 = vmatpush.xpose.msra.mxu0 %v212
    %243 = vmatpush.xpose.msra.mxu0 %v211
    %244 = vmatmul.f32.gmra.mxu0 %v227
    %v245 = vpop.f32.mrf.mxu0
    %v246 = vadd.f32 0.0, %v245
    %247 = vdwg.mxu0
    %v249 = vrot.slane %v246, 6
    %v251 = vadd.f32 %v206, %v249
    %v252 = vtanh.pop %v251
    %v254 = vrot.slane %v252, 2
    %256 = vmatpush.xpose.msra.mxu0 %v226
    %257 = vmatpush.xpose.msra.mxu0 %v225
    %258 = vmatpush.xpose.msra.mxu0 %v224
    %259 = vmatpush.xpose.msra.mxu0 %v223
    %260 = vmatpush.xpose.msra.mxu0 %v222
    %261 = vmatpush.xpose.msra.mxu0 %v221
    %262 = vmatpush.xpose.msra.mxu0 %v220
    %263 = vmatpush.xpose.msra.mxu0 %v219
    %264 = vmatpush.xpose.msra.mxu0 %v218
    %265 = vmatpush.xpose.msra.mxu0 %v217
    %266 = vmatpush.xpose.msra.mxu0 %v216
    %267 = vmatpush.xpose.msra.mxu0 %v215
    %268 = vmatpush.xpose.msra.mxu0 %v214
    %269 = vmatpush.xpose.msra.mxu0 %v213
    %270 = vmatpush.xpose.msra.mxu0 %v212
    %271 = vmatpush.xpose.msra.mxu0 %v211
    %272 = vmatmul.f32.gmra.mxu0 %v254
    %v273 = vpop.f32.mrf.mxu0
    %v274 = vadd.f32 0.0, %v273
    %275 = vdwg.mxu0
    %v277 = vrot.slane %v274, 4
    %v279 = vadd.f32 %v206, %v277
    %v280 = vtanh.pop %v279
    %v282 = vrot.slane %v280, 4
    %284 = vmatpush.xpose.msra.mxu0 %v226
    %285 = vmatpush.xpose.msra.mxu0 %v225
    %286 = vmatpush.xpose.msra.mxu0 %v224
    %287 = vmatpush.xpose.msra.mxu0 %v223
    %288 = vmatpush.xpose.msra.mxu0 %v222
    %289 = vmatpush.xpose.msra.mxu0 %v221
    %290 = vmatpush.xpose.msra.mxu0 %v220
    %291 = vmatpush.xpose.msra.mxu0 %v219
    %292 = vmatpush.xpose.msra.mxu0 %v218
    %293 = vmatpush.xpose.msra.mxu0 %v217
    %294 = vmatpush.xpose.msra.mxu0 %v216
    %295 = vmatpush.xpose.msra.mxu0 %v215
    %296 = vmatpush.xpose.msra.mxu0 %v214
    %297 = vmatpush.xpose.msra.mxu0 %v213
    %298 = vmatpush.xpose.msra.mxu0 %v212
    %299 = vmatpush.xpose.msra.mxu0 %v211
    %300 = vmatmul.f32.gmra.mxu0 %v282
    %v301 = vpop.f32.mrf.mxu0
    %v302 = vadd.f32 0.0, %v301
    %303 = vdwg.mxu0
    %v305 = vrot.slane %v302, 2
    %v307 = vadd.f32 %v206, %v305
    %v308 = vtanh.pop %v307
    %v310 = vrot.slane %v308, 6
    %312 = vmatpush.xpose.msra.mxu0 %v226
    %313 = vmatpush.xpose.msra.mxu0 %v225
    %314 = vmatpush.xpose.msra.mxu0 %v224
    %315 = vmatpush.xpose.msra.mxu0 %v223
    %316 = vmatpush.xpose.msra.mxu0 %v222
    %317 = vmatpush.xpose.msra.mxu0 %v221
    %318 = vmatpush.xpose.msra.mxu0 %v220
    %319 = vmatpush.xpose.msra.mxu0 %v219
    %320 = vmatpush.xpose.msra.mxu0 %v218
    %321 = vmatpush.xpose.msra.mxu0 %v217
    %322 = vmatpush.xpose.msra.mxu0 %v216
    %323 = vmatpush.xpose.msra.mxu0 %v215
    %324 = vmatpush.xpose.msra.mxu0 %v214
    %325 = vmatpush.xpose.msra.mxu0 %v213
    %326 = vmatpush.xpose.msra.mxu0 %v212
    %327 = vmatpush.xpose.msra.mxu0 %v211
    %328 = vmatmul.f32.gmra.mxu0 %v310
    %v329 = vpop.f32.mrf.mxu0
    %v330 = vadd.f32 0.0, %v329
    %331 = vdwg.mxu0
    %v332 = vadd.f32 %v209, %v330
    %v333 = vtanh.pop %v332
    %334 = vmatpush.xpose.msra.mxu0 %v226
    %335 = vmatpush.xpose.msra.mxu0 %v225
    %336 = vmatpush.xpose.msra.mxu0 %v224
    %337 = vmatpush.xpose.msra.mxu0 %v223
    %338 = vmatpush.xpose.msra.mxu0 %v222
    %339 = vmatpush.xpose.msra.mxu0 %v221
    %340 = vmatpush.xpose.msra.mxu0 %v220
    %341 = vmatpush.xpose.msra.mxu0 %v219
    %342 = vmatpush.xpose.msra.mxu0 %v218
    %343 = vmatpush.xpose.msra.mxu0 %v217
    %344 = vmatpush.xpose.msra.mxu0 %v216
    %345 = vmatpush.xpose.msra.mxu0 %v215
    %346 = vmatpush.xpose.msra.mxu0 %v214
    %347 = vmatpush.xpose.msra.mxu0 %v213
    %348 = vmatpush.xpose.msra.mxu0 %v212
    %349 = vmatpush.xpose.msra.mxu0 %v211
    %350 = vmatmul.f32.gmra.mxu0 %v333
    %v351 = vpop.f32.mrf.mxu0
    %v352 = vadd.f32 0.0, %v351
    %353 = vdwg.mxu0
    %v355 = vrot.slane %v352, 6
    %v357 = vadd.f32 %v209, %v355
    %v358 = vtanh.pop %v357
    %v360 = vrot.slane %v358, 2
    %362 = vmatpush.xpose.msra.mxu0 %v226
    %363 = vmatpush.xpose.msra.mxu0 %v225
    %364 = vmatpush.xpose.msra.mxu0 %v224
    %365 = vmatpush.xpose.msra.mxu0 %v223
    %366 = vmatpush.xpose.msra.mxu0 %v222
    %367 = vmatpush.xpose.msra.mxu0 %v221
    %368 = vmatpush.xpose.msra.mxu0 %v220
    %369 = vmatpush.xpose.msra.mxu0 %v219
    %370 = vmatpush.xpose.msra.mxu0 %v218
    %371 = vmatpush.xpose.msra.mxu0 %v217
    %372 = vmatpush.xpose.msra.mxu0 %v216
    %373 = vmatpush.xpose.msra.mxu0 %v215
    %374 = vmatpush.xpose.msra.mxu0 %v214
    %375 = vmatpush.xpose.msra.mxu0 %v213
    %376 = vmatpush.xpose.msra.mxu0 %v212
    %377 = vmatpush.xpose.msra.mxu0 %v211
    %378 = vmatmul.f32.gmra.mxu0 %v360
    %v379 = vpop.f32.mrf.mxu0
    %v380 = vadd.f32 0.0, %v379
    %381 = vdwg.mxu0
    %v383 = vrot.slane %v380, 4
    %v385 = vadd.f32 %v209, %v383
    %v386 = vtanh.pop %v385
    %v388 = vrot.slane %v386, 4
    %390 = vmatpush.xpose.msra.mxu0 %v226
    %391 = vmatpush.xpose.msra.mxu0 %v225
    %392 = vmatpush.xpose.msra.mxu0 %v224
    %393 = vmatpush.xpose.msra.mxu0 %v223
    %394 = vmatpush.xpose.msra.mxu0 %v222
    %395 = vmatpush.xpose.msra.mxu0 %v221
    %396 = vmatpush.xpose.msra.mxu0 %v220
    %397 = vmatpush.xpose.msra.mxu0 %v219
    %398 = vmatpush.xpose.msra.mxu0 %v218
    %399 = vmatpush.xpose.msra.mxu0 %v217
    %400 = vmatpush.xpose.msra.mxu0 %v216
    %401 = vmatpush.xpose.msra.mxu0 %v215
    %402 = vmatpush.xpose.msra.mxu0 %v214
    %403 = vmatpush.xpose.msra.mxu0 %v213
    %404 = vmatpush.xpose.msra.mxu0 %v212
    %405 = vmatpush.xpose.msra.mxu0 %v211
    %406 = vmatmul.f32.gmra.mxu0 %v388
    %v407 = vpop.f32.mrf.mxu0
    %v408 = vadd.f32 0.0, %v407
    %409 = vdwg.mxu0
    %v411 = vrot.slane %v408, 2
    %v413 = vadd.f32 %v209, %v411
    %v414 = vtanh.pop %v413
    %v415 = vld [vmem:[%s5] sm:$0x3]
    %v416 = vld [vmem:[%s6] sm:$0x1]
    %v418 = vperm.slane %v416, 0
    %v421 = vrot.slane %v414, 6
    %423 = vmatpush.xpose.msra.mxu0 0.0
    %424 = vmatpush.xpose.msra.mxu0 0.0
    %425 = vmatpush.xpose.msra.mxu0 0.0
    %426 = vmatpush.xpose.msra.mxu0 0.0
    %427 = vmatpush.xpose.msra.mxu0 0.0
    %428 = vmatpush.xpose.msra.mxu0 0.0
    %429 = vmatpush.xpose.msra.mxu0 0.0
    %430 = vmatpush.xpose.msra.mxu0 0.0
    %431 = vmatpush.xpose.msra.mxu0 0.0
    %432 = vmatpush.xpose.msra.mxu0 0.0
    %433 = vmatpush.xpose.msra.mxu0 0.0
    %434 = vmatpush.xpose.msra.mxu0 0.0
    %435 = vmatpush.xpose.msra.mxu0 0.0
    %436 = vmatpush.xpose.msra.mxu0 0.0
    %437 = vmatpush.xpose.msra.mxu0 0.0
    %438 = vmatpush.xpose.msra.mxu0 %v415
    %439 = vmatmul.f32.gmra.mxu0 %v421
    %v440 = vpop.f32.mrf.mxu0
    %v441 = vadd.f32 %v418, %v440
    %442 = vdwg.mxu0
    %vm443 = vcmask 9216
    %444 = vst.msk [vmem:[#allocation2] sm:$0x3] %vm443, %v441
    // Predicated region
    $region30: #{rnn_forward.1} parent=1 // pred_check
      _
    $region31: #{rnn_forward.1} parent=1 // pred_check_branch
      %446 = sbr.rel (0) target = $region33
    $region32: #{rnn_forward.1} parent=1 // pred_region
      %448 = vsyncadd [#allocation3], 0
      %s450 = sshll.u32 [#allocation2], 4
      %s451 = int_to_ptr.vmem [resolvable:$true] %s450
      %s452 = sshll.u32 %s7, 4
      %s453 = int_to_ptr.hbm [resolvable:$true] %s452
      %455 = dma.vmem_to_hbm [thread:$0]  %s451, 32, %s453, [#allocation3]
    $region33: #{rnn_forward.1} parent=1 // pred_fallthru
      _
    // Predicated region
    $region34: #{rnn_forward.1} parent=1 // pred_check
      _
    $region35: #{rnn_forward.1} parent=1 // pred_check_branch
      %457 = sbr.rel (0) target = $region37
    $region36: #{rnn_forward.1} parent=1 // pred_region
      %459 = dma.done [#allocation3], 32
    $region37: #{rnn_forward.1} parent=1 // pred_fallthru
      _
    %460 = vsyncpa [#allocation3], 1

</llo_original>
